<compile_context>
chip_gen: v5e
topology: v5e:2x2
jax: 0.10.0
libtpu: 0.0.40
codegen_flags: <defaults>
</compile_context>

<pallas_src>
import functools
import math

import jax
import jax.numpy as jnp
from jax.experimental import pallas as pl
from jax.experimental.pallas import tpu as pltpu

_MAX_ROW_TILE = 8192          # upper bound on the sublane (row) tile


# --------------------------------------------------------------------------
# Small helpers (trace-time Python on static shapes)
# --------------------------------------------------------------------------
def _cdiv(a: int, b: int) -> int:
    return -(-a // b)


def _round_up(n: int, m: int) -> int:
    return ((n + m - 1) // m) * m


def _sublane(dtype) -> int:
    # Sublane packing granularity: f32 -> 8, bf16 -> 16, int8/fp8 -> 32.
    return max(8, 32 // jnp.dtype(dtype).itemsize)


def _chip_vmem_budget():
    """Returns (double-buffered working-set budget, vmem_limit_bytes)."""
    kind = ""
    try:
        kind = jax.devices()[0].device_kind.lower()
    except Exception:
        pass
    if ("v5 lite" in kind) or ("v5e" in kind) or ("v5lite" in kind):
        # v5e (~820 GB/s HBM): 10 MiB blocks already amortize per-step
        # overhead; raise the limit past the 16 MiB scoped default explicitly.
        return 10 * 1024 * 1024, 24 * 1024 * 1024
    # v6e / v7x / default: pure HBM-bound streaming wants ~20 MiB of in-flight
    # double-buffered blocks; 36 MiB limit stays under v7x's 64 MiB physical.
    return 20 * 1024 * 1024, 36 * 1024 * 1024


def _pick_row_tile(rows: int, bytes_per_row: int, sublane: int,
                   budget: int) -> int:
    """Largest row tile whose double-buffered working set fits the budget."""
    tile = budget // max(1, bytes_per_row)
    tile = (tile // sublane) * sublane
    tile = max(tile, sublane)
    tile = min(tile, _MAX_ROW_TILE)
    if tile >= rows:
        tile = rows            # block dims == array dims -> always legal
    return tile


def _split_rows_for_cores(rows: int, tile_rows: int, sublane: int,
                          other_blocks: int) -> int:
    """Ensure >= 2 blocks on a parallel axis so v7x's 2nd TensorCore is used."""
    n_row = _cdiv(rows, tile_rows)
    if n_row * other_blocks >= 2 or rows <= sublane:
        return tile_rows
    half_rows = _round_up(_cdiv(rows, 2), sublane)
    return half_rows if half_rows < rows else tile_rows


def _largest_aligned_divisor(n: int, align: int, cap: int) -> int:
    """Largest divisor of `n` that is a multiple of `align` and <= cap."""
    cap = max(align, min(n, cap))
    d = (cap // align) * align
    while d >= align:
        if n % d == 0:
            return d
        d -= align
    return align


# --------------------------------------------------------------------------
# Kernels
# --------------------------------------------------------------------------
def _sigmoid_f32(g):
    # sigmoid(x) == 0.5 * (tanh(x/2) + 1): a single EUP transcendental.
    return 0.5 * jnp.tanh(0.5 * g) + 0.5


def _glu_fused_kernel(x_ref, o_ref):
    """Full-width block (rows, 2H): split halves in-kernel (lane-aligned when
    H % 128 == 0, so the gate slice is a plain offset load, no relayout)."""
    h = o_ref.shape[-1]
    a = x_ref[:, :h].astype(jnp.float32)
    g = x_ref[:, h:].astype(jnp.float32)
    o_ref[...] = (a * _sigmoid_f32(g)).astype(o_ref.dtype)


def _glu_split_kernel(a_ref, g_ref, o_ref):
    """DMA-level chunk split: a_ref = 'outputs' block, g_ref = 'gate' block."""
    a = a_ref[...].astype(jnp.float32)
    g = g_ref[...].astype(jnp.float32)
    o_ref[...] = (a * _sigmoid_f32(g)).astype(o_ref.dtype)


# --------------------------------------------------------------------------
# pallas_call wrapper (all dims route through here after a free flatten)
# --------------------------------------------------------------------------
def _glu_lastdim_2d(x2d: jax.Array, budget: int, vmem_limit: int) -> jax.Array:
    """GLU over the last axis of a 2-D array [rows, 2*H] -> [rows, H]."""
    rows, two_h = x2d.shape
    h = two_h // 2
    itemsize = jnp.dtype(x2d.dtype).itemsize
    sublane = _sublane(x2d.dtype)

    # Working set per row for a full-width block: (2H in + H out) * 2 buffers.
    bytes_per_row = 3 * h * itemsize * 2
    fused_fits = bytes_per_row * sublane <= budget

    if fused_fits or h % 128 != 0:
        # Primary path: one contiguous DMA per step, in-kernel split.
        tile_rows = _pick_row_tile(rows, bytes_per_row, sublane, budget)
        tile_rows = _split_rows_for_cores(rows, tile_rows, sublane, 1)
        grid = (_cdiv(rows, tile_rows),)
        limit = vmem_limit
        if not fused_fits:
            # TODO(synk): extremely wide non-128-aligned rows; raise the limit
            # to what the minimal block needs (may exceed physical VMEM).
            limit = max(limit, bytes_per_row * tile_rows + (4 << 20))
        return pl.pallas_call(
            _glu_fused_kernel,
            out_shape=jax.ShapeDtypeStruct((rows, h), x2d.dtype),
            grid=grid,
            in_specs=[pl.BlockSpec((tile_rows, two_h), lambda i: (i, 0))],
            out_specs=pl.BlockSpec((tile_rows, h), lambda i: (i, 0)),
            compiler_params=pltpu.CompilerParams(
                dimension_semantics=("parallel",),
                vmem_limit_bytes=limit),
        )(x2d)

    # Very wide, 128-aligned rows: DMA-level chunk split with lane tiling.
    # Gate tiles are addressed by a column-block offset of n_col (requires
    # h_tile | h); the same HBM buffer is passed twice.
    lane_cap = budget // max(1, 6 * sublane * itemsize)
    h_tile = _largest_aligned_divisor(h, 128, lane_cap)
    n_col = h // h_tile
    tile_rows = _pick_row_tile(rows, 6 * h_tile * itemsize, sublane, budget)
    tile_rows = _split_rows_for_cores(rows, tile_rows, sublane, n_col)
    grid = (_cdiv(rows, tile_rows), n_col)
    return pl.pallas_call(
        _glu_split_kernel,
        out_shape=jax.ShapeDtypeStruct((rows, h), x2d.dtype),
        grid=grid,
        in_specs=[
            pl.BlockSpec((tile_rows, h_tile), lambda i, j: (i, j)),
            pl.BlockSpec((tile_rows, h_tile),
                         lambda i, j, _n=n_col: (i, j + _n)),
        ],
        out_specs=pl.BlockSpec((tile_rows, h_tile), lambda i, j: (i, j)),
        compiler_params=pltpu.CompilerParams(
            dimension_semantics=("parallel", "parallel"),
            vmem_limit_bytes=vmem_limit),
    )(x2d, x2d)


# --------------------------------------------------------------------------
# Public API (matches torch.nn.functional.glu / the GLU module)
# --------------------------------------------------------------------------
@functools.partial(jax.jit, static_argnames=("dim",))
def glu(x: jax.Array, dim: int = -1) -> jax.Array:
    """outputs, gate = chunk(x, 2, dim); return outputs * sigmoid(gate)."""
    ndim = x.ndim
    d = dim % ndim
    size = x.shape[d]
    if size % 2 != 0:
        raise ValueError("chunked dimension must be even")
    half = size // 2

    lead = math.prod(x.shape[:d])
    trail = math.prod(x.shape[d + 1:])
    budget, vmem_limit = _chip_vmem_budget()

    # Row-major flatten: the two chunk halves along dim `d` become the
    # contiguous left/right column halves of this 2-D view (free reshape),
    # so every `dim` reduces to a last-dim GLU with no transpose and a
    # lane-dense output whenever half*trail >= 128.
    x2d = x.reshape(lead, size * trail)
    out2d = _glu_lastdim_2d(x2d, budget, vmem_limit)
    return out2d.reshape(*x.shape[:d], half, *x.shape[d + 1:])


def _glu_ref(x, dim):
    a, g = jnp.split(x, 2, axis=dim)
    return a * jax.nn.sigmoid(g)


if __name__ == "__main__":
    key = jax.random.PRNGKey(0)
    k1, k2, k3, k4, k5 = jax.random.split(key, 5)

    # 1) Conformer conv-module style NCT input, chunk over channels (dim=1).
    #    half=4, trail=16 -> flattened H=64: fused full-width path, no transpose.
    x1 = jax.random.normal(k1, (2, 8, 16), dtype=jnp.float32)
    y1 = jax.block_until_ready(glu(x1, dim=1))
    assert y1.shape == (2, 4, 16), y1.shape
    assert jnp.allclose(y1, _glu_ref(x1, 1), atol=1e-6)

    # 2) NCT dim=1 with wider channels/time -> flattened H=2048 (lane-aligned).
    x2 = jax.random.normal(k2, (2, 32, 128), dtype=jnp.float32)
    y2 = jax.block_until_ready(glu(x2, dim=1))
    assert y2.shape == (2, 16, 128), y2.shape
    assert jnp.allclose(y2, _glu_ref(x2, 1), atol=1e-6)

    # 3) Feature-dim GLU with a non-multiple row count -> two row blocks
    #    (dual-TC split), second one partial/masked.  No jnp.pad anywhere.
    x3 = jax.random.normal(k3, (3, 100, 256), dtype=jnp.float32)
    y3 = jax.block_until_ready(glu(x3, dim=-1))
    assert y3.shape == (3, 100, 128), y3.shape
    assert jnp.allclose(y3, _glu_ref(x3, -1), atol=1e-6)

    # 4) Feature-dim GLU, small unaligned half (H=32): full-width block whose
    #    last dims equal the array dims (always legal).
    x4 = jax.random.normal(k4, (2, 8, 64), dtype=jnp.float32)
    y4 = jax.block_until_ready(glu(x4, dim=-1))
    assert jnp.allclose(y4, _glu_ref(x4, -1), atol=1e-6)

    # 5) bf16 input: sigmoid/multiply computed in f32, stored as bf16.
    x5 = jax.random.normal(k5, (4, 16, 256), dtype=jnp.bfloat16)
    y5 = jax.block_until_ready(glu(x5, dim=-1))
    assert jnp.allclose(y5.astype(jnp.float32),
                        _glu_ref(x5, -1).astype(jnp.float32),
                        atol=2e-2, rtol=2e-2)

    print("KERNEL_OK")
</pallas_src>

<mosaic_0001>
module attributes {stable_mosaic.version = 11 : i64} {
  func.func @_glu_fused_kernel(%arg0: i32, %arg1: memref<2x128xf32, #tpu.memory_space<vmem>>, %arg2: memref<2x64xf32, #tpu.memory_space<vmem>>) attributes {dimension_semantics = [#tpu.dimension_semantics<parallel>], iteration_bounds = array<i64: 1>, scalar_prefetch = 0 : i64, scratch_operands = 0 : i64, tpu.core_type = #tpu.core_type<tc>, window_params = [{transform_indices = @transform_0, window_bounds = array<i64: 2, 128>}, {transform_indices = @transform_1, window_bounds = array<i64: 2, 64>}]} {
    %c0 = arith.constant 0 : index
    %c0_0 = arith.constant 0 : index
    %0 = vector.load %arg1[%c0, %c0_0] : memref<2x128xf32, #tpu.memory_space<vmem>>, vector<2x64xf32>
    %c0_1 = arith.constant 0 : index
    %c64 = arith.constant 64 : index
    %1 = vector.load %arg1[%c0_1, %c64] : memref<2x128xf32, #tpu.memory_space<vmem>>, vector<2x64xf32>
    %cst = arith.constant 5.000000e-01 : f32
    %2 = vector.broadcast %cst : f32 to vector<2x64xf32>
    %3 = arith.mulf %2, %1 : vector<2x64xf32>
    %4 = math.tanh %3 : vector<2x64xf32>
    %cst_2 = arith.constant 5.000000e-01 : f32
    %5 = vector.broadcast %cst_2 : f32 to vector<2x64xf32>
    %6 = arith.mulf %5, %4 : vector<2x64xf32>
    %cst_3 = arith.constant 5.000000e-01 : f32
    %7 = vector.broadcast %cst_3 : f32 to vector<2x64xf32>
    %8 = arith.addf %6, %7 : vector<2x64xf32>
    %9 = arith.mulf %0, %8 : vector<2x64xf32>
    %c0_4 = arith.constant 0 : index
    %c0_5 = arith.constant 0 : index
    %10 = vector.load %arg2[%c0_4, %c0_5] : memref<2x64xf32, #tpu.memory_space<vmem>>, vector<2x64xf32>
    tpu.vector_store %arg2[%c0_4, %c0_5], %9 {strides = array<i32>} : memref<2x64xf32, #tpu.memory_space<vmem>>, vector<2x64xf32>,
    return
  }
  func.func @transform_0(%arg0: i32) -> (i32, i32) {
    %c0_i32 = arith.constant 0 : i32
    %c0_i32_0 = arith.constant 0 : i32
    return %arg0, %c0_i32 : i32, i32
  }
  func.func @transform_1(%arg0: i32) -> (i32, i32) {
    %c0_i32 = arith.constant 0 : i32
    %c0_i32_0 = arith.constant 0 : i32
    return %arg0, %c0_i32 : i32, i32
  }
}

</mosaic_0001>

<llo_original>
// kernel: glu.1
$region0: #{glu.1}
  #allocation0 [shape = 'u32[]', space=smem, size = 0x4, offset = 0x4, fixed_abs, tag = 'smem constant byte address 0x4 - core index']
  #allocation1 [shape = 'u32[72,128]{1,0:T(1,128)}', space=vmem, size = 0x9000, scoped, tag = 'internal scratch']
  %s0 = inlined_call_operand.vmem [shape: f32[2,128], index: 0, kind: input, shape index: {}]
  %s1 = inlined_call_operand.vmem [shape: f32[2,64], index: 1, kind: output, shape index: {}]
  %s2 = sld [smem:[#allocation0]]
  $region14: #{glu.1} parent=0
    _
  %s4 = ssub.s32 1, %s2
  %s5 = scalar_select 0, %s4, %s2
  // Predicated region
  $region2: #{glu.1} parent=0 // pred_check
    _
  $region3: #{glu.1} parent=0 // pred_check_branch
    %7 = sbr.rel (0) target = $region5
  $region4: #{glu.1} parent=0 // pred_region
    _
  $region5: #{glu.1} parent=0 // pred_fallthru
    _
  %v8 = vld [vmem:[%s0] sm:$0x3]
  %v9 = vmul.f32 %v8, 0.5
  %v10 = vtanh.pop %v9
  %v11 = vmul.f32 %v10, 0.5
  %v12 = vadd.f32 %v11, 0.5
  %14 = vrot.lane.b32.xlu0 %v12, 64
  %v15 = vpop.permute.xlu0 %14
  %v17 = vmul.f32 %v8, %v15
  %vm18 = vcmask 517120
  %19 = vst.msk [vmem:[%s1] sm:$0x3] %vm18, %v17
  // Predicated region
  $region6: #{glu.1} parent=0 // pred_check
    _
  $region7: #{glu.1} parent=0 // pred_check_branch
    %21 = sbr.rel (0) target = $region9
  $region8: #{glu.1} parent=0 // pred_region
    _
  $region9: #{glu.1} parent=0 // pred_fallthru
    _
  // Predicated region
  $region10: #{glu.1} parent=0 // pred_check
    _
  $region11: #{glu.1} parent=0 // pred_check_branch
    %23 = sbr.rel (0) target = $region13
  $region12: #{glu.1} parent=0 // pred_region
    _
  $region13: #{glu.1} parent=0 // pred_fallthru
    _

</llo_original>
